<compile_context>
chip_gen: v5e
topology: v5e:2x2
jax: 0.10.0
libtpu: 0.0.40
codegen_flags: <defaults>
</compile_context>

<pallas_src>
from typing import NamedTuple, Optional

import jax
import jax.numpy as jnp
from jax.experimental import pallas as pl
from jax.experimental.pallas import tpu as pltpu

LANE = 128
_MIB = 1024 * 1024


def _round_up(x, m):
    return (x + m - 1) // m * m


def _vmem_capacity_bytes():
    """Per-core VMEM, queried at trace time; conservative fallback (v7x size)."""
    try:
        info = pltpu.get_tpu_info()
        cap = getattr(info, "vmem_capacity_bytes", None)
        if cap:
            return int(cap)
    except Exception:
        pass
    return 64 * _MIB


class FCParams(NamedTuple):
    w1: jax.Array   # [nfeat_p, nhid1_p]  lane-padded, [in, out] layout
    b1: jax.Array   # [1, nhid1_p]
    w2: jax.Array   # [nhid1_p, nout_p]
    b2: jax.Array   # [1, nout_p]
    nfeat: int
    nhid1: int
    nout: int


def prepare_fc_params(w1, b1, w2, b2, dtype=None) -> FCParams:
    """Pad parameters to 128-lane multiples ONCE (amortized over all forwards).

    Zero padding is semantics-safe: padded columns of W1 produce h = ReLU(0) = 0,
    which contributes nothing through the (zero) padded rows of W2.
    Optionally cast to `dtype` (e.g. jnp.bfloat16 for the fast MXU path).
    """
    nfeat, nhid1 = w1.shape
    nout = w2.shape[1]
    if dtype is not None:
        w1, b1, w2, b2 = (a.astype(dtype) for a in (w1, b1, w2, b2))
    b1 = b1.reshape(1, nhid1)
    b2 = b2.reshape(1, nout)
    nfeat_p = _round_up(nfeat, LANE)
    nhid1_p = _round_up(nhid1, LANE)
    nout_p = _round_up(nout, LANE)
    if (nfeat_p, nhid1_p, nout_p) != (nfeat, nhid1, nout):
        w1 = jnp.pad(w1, ((0, nfeat_p - nfeat), (0, nhid1_p - nhid1)))
        b1 = jnp.pad(b1, ((0, 0), (0, nhid1_p - nhid1)))
        w2 = jnp.pad(w2, ((0, nhid1_p - nhid1), (0, nout_p - nout)))
        b2 = jnp.pad(b2, ((0, 0), (0, nout_p - nout)))
    return FCParams(w1, b1, w2, b2, nfeat, nhid1, nout)


# --------------------------------------------------------------------------- #
# Kernels
# --------------------------------------------------------------------------- #
def _fc_kernel_resident(x_ref, w1_ref, b1_ref, w2_ref, b2_ref, o_ref):
    # Layer 1 on the MXU with f32 accumulation; bias/ReLU in f32 on the VPU.
    h = jnp.dot(x_ref[...].astype(w1_ref.dtype), w1_ref[...],
                preferred_element_type=jnp.float32)
    h = jnp.maximum(h + b1_ref[...].astype(jnp.float32), 0.0)
    # Layer 2 (h cast to the weight dtype for the MXU; accumulate in f32).
    out = jnp.dot(h.astype(w2_ref.dtype), w2_ref[...],
                  preferred_element_type=jnp.float32)
    o_ref[...] = (out + b2_ref[...].astype(jnp.float32)).astype(o_ref.dtype)


def _fc_kernel_hidden_chunked(x_ref, w1_ref, b1_ref, w2_ref, b2_ref, o_ref,
                              acc_ref):
    # Fallback when weights do not fit residently: reduce over nhid1 chunks
    # with an f32 accumulator (init at j == 0, finalize at the last j).
    j = pl.program_id(1)

    @pl.when(j == 0)
    def _():
        acc_ref[...] = jnp.zeros_like(acc_ref)

    h = jnp.dot(x_ref[...].astype(w1_ref.dtype), w1_ref[...],
                preferred_element_type=jnp.float32)
    h = jnp.maximum(h + b1_ref[...].astype(jnp.float32), 0.0)
    acc_ref[...] += jnp.dot(h.astype(w2_ref.dtype), w2_ref[...],
                            preferred_element_type=jnp.float32)

    @pl.when(j == pl.num_programs(1) - 1)
    def _():
        o_ref[...] = (acc_ref[...]
                      + b2_ref[...].astype(jnp.float32)).astype(o_ref.dtype)


# --------------------------------------------------------------------------- #
# Tiling heuristics
# --------------------------------------------------------------------------- #
def _choose_tm(n_rows, sub, fits, tm_max, step_overhead_rows=256):
    """Pick a row-tile size (multiple of `sub`) that fits VMEM, minimizes
    (row-padding waste + per-grid-step overhead), and when possible yields
    >= 2 row tiles so v7x can shard the 'parallel' axis across both cores."""
    n_sub = _round_up(max(n_rows, 1), sub)
    cands = set()
    t = sub
    while t < min(tm_max, n_sub):
        cands.add(t)
        t *= 2
    cands.add(min(_round_up(tm_max, sub), n_sub))
    for k in (1, 2, 3, 4, 6, 8, 12, 16):          # exact k-way splits (min waste)
        cands.add(min(n_sub, _round_up(-(-n_sub // k), sub)))
    best, best_key = None, None
    for tm in sorted(cands):
        if tm < sub or tm % sub or not fits(tm):
            continue
        n_p = _round_up(n_sub, tm)
        tiles = n_p // tm
        single_tile_penalty = int(tiles < 2 and n_sub >= 2 * sub)
        cost = (n_p - n_rows) + tiles * step_overhead_rows
        key = (single_tile_penalty, cost, tiles, -tm)
        if best_key is None or key < best_key:
            best_key, best = key, tm
    return best   # None if nothing fits


# --------------------------------------------------------------------------- #
# Forward
# --------------------------------------------------------------------------- #
def fc_forward(x, params: FCParams, *, tm_max: int = 2048,
               force_hidden_chunk: Optional[int] = None):
    """x: [N, nfeat] -> [N, nout]; same math as FC.forward: fc2(relu(fc1(x)))."""
    N, nfeat = x.shape
    assert nfeat == params.nfeat, "x feature dim does not match params"
    nfeat_p, nhid1_p = params.w1.shape
    nout_p = params.w2.shape[1]
    dtype = x.dtype
    bpe_x = jnp.dtype(dtype).itemsize
    bpe_w = jnp.dtype(params.w1.dtype).itemsize
    sub = max(8, 32 // bpe_x)        # sublane packing: 8 f32 / 16 bf16 / 32 int8

    # Generation-aware VMEM budget (v7x 64 MiB/core, v5e/v6e 128 MiB).
    vmem_cap = _vmem_capacity_bytes()
    vmem_limit = max(32 * _MIB, min(vmem_cap - 8 * _MIB, 112 * _MIB))
    budget = vmem_limit - 4 * _MIB

    # Pallas double-buffers every input by default, including constant-index
    # weights/biases -> count them 2x in the resident-footprint estimate.
    weights_bytes = 2 * (nfeat_p * nhid1_p + nhid1_p * nout_p
                         + nhid1_p + nout_p) * bpe_w

    def fits_resident(tm_):
        act = 2 * tm_ * nfeat_p * bpe_x + 2 * tm_ * nout_p * bpe_x   # x/out tiles
        inter = tm_ * nhid1_p * 4 + tm_ * nout_p * 4                 # f32 h + f32 out
        return act + inter + weights_bytes <= budget

    use_chunked = force_hidden_chunk is not None
    tm = None
    if not use_chunked:
        tm = _choose_tm(N, sub, fits_resident, tm_max)
        use_chunked = tm is None        # weights too big to keep VMEM-resident

    if not use_chunked:
        n_p = _round_up(_round_up(N, sub), tm)
        x_in = x if (n_p, nfeat_p) == (N, nfeat) else jnp.pad(
            x, ((0, n_p - N), (0, nfeat_p - nfeat)))
        flops = 2 * n_p * (nfeat_p * nhid1_p + nhid1_p * nout_p)
        bytes_accessed = (x_in.size * bpe_x + n_p * nout_p * bpe_x
                          + (params.w1.size + params.b1.size
                             + params.w2.size + params.b2.size) * bpe_w)
        out_p = pl.pallas_call(
            _fc_kernel_resident,
            out_shape=jax.ShapeDtypeStruct((n_p, nout_p), dtype),
            grid=(n_p // tm,),
            in_specs=[
                pl.BlockSpec((tm, nfeat_p), lambda i: (i, 0)),       # x row tile
                pl.BlockSpec((nfeat_p, nhid1_p), lambda i: (0, 0)),  # W1 resident
                pl.BlockSpec((1, nhid1_p), lambda i: (0, 0)),        # b1 resident
                pl.BlockSpec((nhid1_p, nout_p), lambda i: (0, 0)),   # W2 resident
                pl.BlockSpec((1, nout_p), lambda i: (0, 0)),         # b2 resident
            ],
            out_specs=pl.BlockSpec((tm, nout_p), lambda i: (i, 0)),
            compiler_params=pltpu.CompilerParams(
                dimension_semantics=("parallel",),    # megacore-shard row tiles
                vmem_limit_bytes=vmem_limit),
            cost_estimate=pl.CostEstimate(
                flops=flops, transcendentals=0, bytes_accessed=bytes_accessed),
        )(x_in, params.w1, params.b1, params.w2, params.b2)
    else:
        # ---- fallback: chunk nhid1, accumulate the second matmul in f32 ----
        if force_hidden_chunk is not None:
            th = force_hidden_chunk
        else:
            th = None
            blocks = nhid1_p // LANE
            for k in range(1, blocks + 1):            # largest chunk that fits
                if blocks % k:
                    continue
                cand = nhid1_p // k
                wbytes_c = 2 * (nfeat_p * cand + cand * nout_p
                                + cand + nout_p) * bpe_w
                if wbytes_c <= budget // 2:
                    th = cand
                    break
            if th is None:
                # TODO(synk): add a reduction grid axis over nfeat for configs
                # where even one 128-wide W1 column chunk exceeds VMEM.
                raise ValueError("FC weights too large for VMEM-resident tiling")
        assert th % LANE == 0 and nhid1_p % th == 0

        wbytes = 2 * (nfeat_p * th + th * nout_p + th + nout_p) * bpe_w

        def fits_chunked(tm_):
            act = 2 * tm_ * nfeat_p * bpe_x + 2 * tm_ * nout_p * bpe_x
            inter = tm_ * th * 4 + tm_ * nout_p * 4   # f32 h chunk + f32 acc scratch
            return act + inter + wbytes <= budget

        tm = _choose_tm(N, sub, fits_chunked, tm_max)
        if tm is None:
            raise ValueError("FC tiles too large for VMEM")
        n_p = _round_up(_round_up(N, sub), tm)
        x_in = x if (n_p, nfeat_p) == (N, nfeat) else jnp.pad(
            x, ((0, n_p - N), (0, nfeat_p - nfeat)))
        flops = 2 * n_p * (nfeat_p * nhid1_p + nhid1_p * nout_p)
        bytes_accessed = (x_in.size * bpe_x * (nhid1_p // th)
                          + n_p * nout_p * bpe_x
                          + (params.w1.size + params.b1.size
                             + params.w2.size + params.b2.size) * bpe_w)
        out_p = pl.pallas_call(
            _fc_kernel_hidden_chunked,
            out_shape=jax.ShapeDtypeStruct((n_p, nout_p), dtype),
            grid=(n_p // tm, nhid1_p // th),
            in_specs=[
                pl.BlockSpec((tm, nfeat_p), lambda i, j: (i, 0)),   # x row tile
                pl.BlockSpec((nfeat_p, th), lambda i, j: (0, j)),   # W1 column chunk
                pl.BlockSpec((1, th), lambda i, j: (0, j)),         # b1 chunk
                pl.BlockSpec((th, nout_p), lambda i, j: (j, 0)),    # W2 row chunk
                pl.BlockSpec((1, nout_p), lambda i, j: (0, 0)),     # b2 resident
            ],
            out_specs=pl.BlockSpec((tm, nout_p), lambda i, j: (i, 0)),
            scratch_shapes=[pltpu.VMEM((tm, nout_p), jnp.float32)],
            compiler_params=pltpu.CompilerParams(
                dimension_semantics=("parallel", "arbitrary"),
                vmem_limit_bytes=vmem_limit),
            cost_estimate=pl.CostEstimate(
                flops=flops, transcendentals=0, bytes_accessed=bytes_accessed),
        )(x_in, params.w1, params.b1, params.w2, params.b2)

    if out_p.shape == (N, params.nout):
        return out_p                    # aligned case: no extra slice / HBM pass
    return out_p[:N, :params.nout]


def init_fc_params(key, nfeat, nhid1, nout, dtype=jnp.float32):
    """nn.Linear-style init (uniform +-1/sqrt(fan_in)); weights in [in, out] layout."""
    k1, k2, k3, k4 = jax.random.split(key, 4)
    bound1 = 1.0 / float(nfeat) ** 0.5
    bound2 = 1.0 / float(nhid1) ** 0.5
    w1 = jax.random.uniform(k1, (nfeat, nhid1), dtype, -bound1, bound1)
    b1 = jax.random.uniform(k2, (1, nhid1), dtype, -bound1, bound1)
    w2 = jax.random.uniform(k3, (nhid1, nout), dtype, -bound2, bound2)
    b2 = jax.random.uniform(k4, (1, nout), dtype, -bound2, bound2)
    return w1, b1, w2, b2


if __name__ == "__main__":
    key = jax.random.PRNGKey(0)
    kx, kp, kc = jax.random.split(key, 3)

    # Small shapes consistent with FC(nfeat, nhid1, nout)
    N, nfeat, nhid1, nout = 8, 32, 64, 16
    x = jax.random.normal(kx, (N, nfeat), dtype=jnp.float32)
    w1, b1, w2, b2 = init_fc_params(kp, nfeat, nhid1, nout)

    def ref_fc(xx, ww1, bb1, ww2, bb2):
        return jnp.maximum(xx @ ww1 + bb1, 0.0) @ ww2 + bb2

    # 1) f32, VMEM-resident weight path (weights padded once, reused per call)
    params = prepare_fc_params(w1, b1, w2, b2)
    out = jax.block_until_ready(fc_forward(x, params))
    ref = ref_fc(x, w1, b1, w2, b2)
    assert out.shape == (N, nout)
    assert jnp.allclose(out, ref, atol=1e-5, rtol=1e-5), "f32 resident path mismatch"

    # 2) optional bf16 MXU path (f32 accumulation; looser tolerance vs f32 ref)
    params_bf16 = prepare_fc_params(w1, b1, w2, b2, dtype=jnp.bfloat16)
    out_bf16 = jax.block_until_ready(fc_forward(x.astype(jnp.bfloat16), params_bf16))
    assert out_bf16.shape == (N, nout)
    assert jnp.allclose(out_bf16.astype(jnp.float32), ref, atol=5e-2, rtol=5e-2), \
        "bf16 path mismatch"

    # 3) hidden-chunked fallback (forced at a small shape to exercise the
    #    f32-accumulator init/finalize pattern; normally only used when the
    #    weight matrices are too large to keep VMEM-resident)
    nhid1_big = 256
    w1c, b1c, w2c, b2c = init_fc_params(kc, nfeat, nhid1_big, nout)
    params_c = prepare_fc_params(w1c, b1c, w2c, b2c)
    out_c = jax.block_until_ready(fc_forward(x, params_c, force_hidden_chunk=128))
    ref_c = ref_fc(x, w1c, b1c, w2c, b2c)
    assert out_c.shape == (N, nout)
    assert jnp.allclose(out_c, ref_c, atol=1e-4, rtol=1e-4), "chunked path mismatch"

    print("KERNEL_OK")
</pallas_src>

<mosaic_0001>
module attributes {stable_mosaic.version = 11 : i64} {
  func.func @_fc_kernel_resident(%arg0: i32, %arg1: memref<8x128xf32, #tpu.memory_space<vmem>>, %arg2: memref<128x128xf32, #tpu.memory_space<vmem>>, %arg3: memref<1x128xf32, #tpu.memory_space<vmem>>, %arg4: memref<128x128xf32, #tpu.memory_space<vmem>>, %arg5: memref<1x128xf32, #tpu.memory_space<vmem>>, %arg6: memref<8x128xf32, #tpu.memory_space<vmem>>) attributes {dimension_semantics = [#tpu.dimension_semantics<parallel>], iteration_bounds = array<i64: 1>, scalar_prefetch = 0 : i64, scratch_operands = 0 : i64, tpu.core_type = #tpu.core_type<tc>, window_params = [{transform_indices = @transform_0, window_bounds = array<i64: 8, 128>}, {pipeline_mode = #tpu.pipeline_mode<synchronous>, transform_indices = @transform_1, window_bounds = array<i64: 128, 128>}, {pipeline_mode = #tpu.pipeline_mode<synchronous>, transform_indices = @transform_2, window_bounds = array<i64: 1, 128>}, {pipeline_mode = #tpu.pipeline_mode<synchronous>, transform_indices = @transform_3, window_bounds = array<i64: 128, 128>}, {pipeline_mode = #tpu.pipeline_mode<synchronous>, transform_indices = @transform_4, window_bounds = array<i64: 1, 128>}, {transform_indices = @transform_5, window_bounds = array<i64: 8, 128>}]} {
    %c0 = arith.constant 0 : index
    %c0_0 = arith.constant 0 : index
    %0 = vector.load %arg1[%c0, %c0_0] : memref<8x128xf32, #tpu.memory_space<vmem>>, vector<8x128xf32>
    %c0_1 = arith.constant 0 : index
    %c0_2 = arith.constant 0 : index
    %1 = vector.load %arg2[%c0_1, %c0_2] : memref<128x128xf32, #tpu.memory_space<vmem>>, vector<128x128xf32>
    %cst = arith.constant dense<0.000000e+00> : vector<8x128xf32>
    %2 = tpu.matmul %0, %1, %cst {dimension_numbers = #tpu.dot_dimension_numbers<[1], [0], [0], [1], [0, 0, 1, 1], [], []>} : vector<8x128xf32>, vector<128x128xf32>, vector<8x128xf32> -> vector<8x128xf32>
    %c0_3 = arith.constant 0 : index
    %c0_4 = arith.constant 0 : index
    %3 = vector.load %arg3[%c0_3, %c0_4] : memref<1x128xf32, #tpu.memory_space<vmem>>, vector<1x128xf32>
    %4 = vector.broadcast %3 : vector<1x128xf32> to vector<8x128xf32>
    %5 = arith.addf %2, %4 : vector<8x128xf32>
    %cst_5 = arith.constant 0.000000e+00 : f32
    %6 = vector.broadcast %cst_5 : f32 to vector<8x128xf32>
    %7 = arith.maximumf %5, %6 : vector<8x128xf32>
    %c0_6 = arith.constant 0 : index
    %c0_7 = arith.constant 0 : index
    %8 = vector.load %arg4[%c0_6, %c0_7] : memref<128x128xf32, #tpu.memory_space<vmem>>, vector<128x128xf32>
    %cst_8 = arith.constant dense<0.000000e+00> : vector<8x128xf32>
    %9 = tpu.matmul %7, %8, %cst_8 {dimension_numbers = #tpu.dot_dimension_numbers<[1], [0], [0], [1], [0, 0, 1, 1], [], []>} : vector<8x128xf32>, vector<128x128xf32>, vector<8x128xf32> -> vector<8x128xf32>
    %c0_9 = arith.constant 0 : index
    %c0_10 = arith.constant 0 : index
    %10 = vector.load %arg5[%c0_9, %c0_10] : memref<1x128xf32, #tpu.memory_space<vmem>>, vector<1x128xf32>
    %11 = vector.broadcast %10 : vector<1x128xf32> to vector<8x128xf32>
    %12 = arith.addf %9, %11 : vector<8x128xf32>
    %c0_11 = arith.constant 0 : index
    %c0_12 = arith.constant 0 : index
    %13 = vector.load %arg6[%c0_11, %c0_12] : memref<8x128xf32, #tpu.memory_space<vmem>>, vector<8x128xf32>
    tpu.vector_store %arg6[%c0_11, %c0_12], %12 {strides = array<i32>} : memref<8x128xf32, #tpu.memory_space<vmem>>, vector<8x128xf32>,
    return
  }
  func.func @transform_0(%arg0: i32) -> (i32, i32) {
    %c0_i32 = arith.constant 0 : i32
    %c0_i32_0 = arith.constant 0 : i32
    return %arg0, %c0_i32 : i32, i32
  }
  func.func @transform_1(%arg0: i32) -> (i32, i32) {
    %c0_i32 = arith.constant 0 : i32
    %c0_i32_0 = arith.constant 0 : i32
    %c0_i32_1 = arith.constant 0 : i32
    return %c0_i32, %c0_i32_0 : i32, i32
  }
  func.func @transform_2(%arg0: i32) -> (i32, i32) {
    %c0_i32 = arith.constant 0 : i32
    %c0_i32_0 = arith.constant 0 : i32
    %c0_i32_1 = arith.constant 0 : i32
    return %c0_i32, %c0_i32_0 : i32, i32
  }
  func.func @transform_3(%arg0: i32) -> (i32, i32) {
    %c0_i32 = arith.constant 0 : i32
    %c0_i32_0 = arith.constant 0 : i32
    %c0_i32_1 = arith.constant 0 : i32
    return %c0_i32, %c0_i32_0 : i32, i32
  }
  func.func @transform_4(%arg0: i32) -> (i32, i32) {
    %c0_i32 = arith.constant 0 : i32
    %c0_i32_0 = arith.constant 0 : i32
    %c0_i32_1 = arith.constant 0 : i32
    return %c0_i32, %c0_i32_0 : i32, i32
  }
  func.func @transform_5(%arg0: i32) -> (i32, i32) {
    %c0_i32 = arith.constant 0 : i32
    %c0_i32_0 = arith.constant 0 : i32
    return %arg0, %c0_i32 : i32, i32
  }
}

</mosaic_0001>

<llo_original>
// kernel: tpu_custom_call.1
$region0: #{tpu_custom_call.1}
  #allocation0 [shape = 'u32[]', space=smem, size = 0x4, offset = 0x4, fixed_abs, tag = 'smem constant byte address 0x4 - core index']
  #allocation1 [shape = 'u32[72,128]{1,0:T(1,128)}', space=vmem, size = 0x9000, scoped, tag = 'internal scratch']
  %s0 = inlined_call_operand.hbm [shape: f32[8,128], index: 0, kind: input, shape index: {}]
  %s1 = inlined_call_operand.hbm [shape: f32[128,128], index: 1, kind: input, shape index: {}]
  %s2 = inlined_call_operand.vmem [shape: f32[1,128], index: 2, kind: input, shape index: {}]
  %s3 = inlined_call_operand.hbm [shape: f32[128,128], index: 3, kind: input, shape index: {}]
  %s4 = inlined_call_operand.vmem [shape: f32[1,128], index: 4, kind: input, shape index: {}]
  %s5 = inlined_call_operand.hbm [shape: f32[8,128], index: 5, kind: output, shape index: {}]
  %s6 = sld [smem:[#allocation0]]
  $region42: #{tpu_custom_call.1} parent=0
    _
  %s8 = ssub.s32 1, %s6
  %s9 = scalar_select 0, %s8, %s6
  $region1: #{tpu_custom_call.1} parent=0
    #allocation2 [shape = 'u8[4096]{0}', space=vmem, size = 0x1000, scoped, tag = 'input window, operand 0, single buffered']
    #allocation3 [shape = 's32[1]{0}', space=sflag, size = 0x4, scoped, tag = 'scoped memory for tpu_custom_call.1']
    #allocation4 [shape = 's32[1]{0}', space=sflag, size = 0x4, scoped, tag = 'scoped memory for tpu_custom_call.1']
    #allocation5 [shape = 'u8[65536]{0}', space=vmem, size = 0x10000, scoped, tag = 'input window, operand 1, single buffered']
    #allocation6 [shape = 's32[1]{0}', space=sflag, size = 0x4, scoped, tag = 'scoped memory for tpu_custom_call.1']
    #allocation7 [shape = 'u8[65536]{0}', space=vmem, size = 0x10000, scoped, tag = 'input window, operand 3, single buffered']
    #allocation8 [shape = 'u8[4096]{0}', space=vmem, size = 0x1000, scoped, tag = 'output window, operand 0, single buffered']
    %10 = vsyncpa [#allocation3], 0
    %11 = vsyncpa [#allocation6], 0
    %12 = vsyncpa [#allocation4], 0
    // Predicated region
    $region2: #{tpu_custom_call.1} parent=1 // pred_check
      _
    $region3: #{tpu_custom_call.1} parent=1 // pred_check_branch
      %14 = sbr.rel (0) target = $region5
    $region4: #{tpu_custom_call.1} parent=1 // pred_region
      %16 = vsyncadd [#allocation3], 0
      %s18 = sshll.u32 %s0, 4
      %s19 = int_to_ptr.hbm [resolvable:$true] %s18
      %s20 = sshll.u32 [#allocation2], 4
      %s21 = int_to_ptr.vmem [resolvable:$true] %s20
      %23 = dma.hbm_to_vmem [thread:$0]  %s19, 128, %s21, [#allocation3]
    $region5: #{tpu_custom_call.1} parent=1 // pred_fallthru
      _
    // Predicated region
    $region6: #{tpu_custom_call.1} parent=1 // pred_check
      _
    $region7: #{tpu_custom_call.1} parent=1 // pred_check_branch
      %25 = sbr.rel (0) target = $region9
    $region8: #{tpu_custom_call.1} parent=1 // pred_region
      %27 = vsyncadd [#allocation6], 0
      %s28 = sshll.u32 %s1, 4
      %s29 = int_to_ptr.hbm [resolvable:$true] %s28
      %s30 = sshll.u32 [#allocation5], 4
      %s31 = int_to_ptr.vmem [resolvable:$true] %s30
      %36 = dma.hbm_to_vmem [thread:$0]  %s29, 2048, %s31, [#allocation6], 128, 128, 8
    $region9: #{tpu_custom_call.1} parent=1 // pred_fallthru
      _
    // Predicated region
    $region10: #{tpu_custom_call.1} parent=1 // pred_check
      _
    $region11: #{tpu_custom_call.1} parent=1 // pred_check_branch
      %38 = sbr.rel (0) target = $region13
    $region12: #{tpu_custom_call.1} parent=1 // pred_region
      _
    $region13: #{tpu_custom_call.1} parent=1 // pred_fallthru
      _
    // Predicated region
    $region14: #{tpu_custom_call.1} parent=1 // pred_check
      _
    $region15: #{tpu_custom_call.1} parent=1 // pred_check_branch
      %40 = sbr.rel (0) target = $region17
    $region16: #{tpu_custom_call.1} parent=1 // pred_region
      %42 = vsyncadd [#allocation6], 0
      %s43 = sshll.u32 %s3, 4
      %s44 = int_to_ptr.hbm [resolvable:$true] %s43
      %s45 = sshll.u32 [#allocation7], 4
      %s46 = int_to_ptr.vmem [resolvable:$true] %s45
      %51 = dma.hbm_to_vmem [thread:$0]  %s44, 2048, %s46, [#allocation6], 128, 128, 8
    $region17: #{tpu_custom_call.1} parent=1 // pred_fallthru
      _
    // Predicated region
    $region18: #{tpu_custom_call.1} parent=1 // pred_check
      _
    $region19: #{tpu_custom_call.1} parent=1 // pred_check_branch
      %53 = sbr.rel (0) target = $region21
    $region20: #{tpu_custom_call.1} parent=1 // pred_region
      _
    $region21: #{tpu_custom_call.1} parent=1 // pred_fallthru
      _
    // Predicated region
    $region22: #{tpu_custom_call.1} parent=1 // pred_check
      _
    $region23: #{tpu_custom_call.1} parent=1 // pred_check_branch
      %55 = sbr.rel (0) target = $region25
    $region24: #{tpu_custom_call.1} parent=1 // pred_region
      %57 = dma.done [#allocation3], 128
    $region25: #{tpu_custom_call.1} parent=1 // pred_fallthru
      _
    // Predicated region
    $region26: #{tpu_custom_call.1} parent=1 // pred_check
      _
    $region27: #{tpu_custom_call.1} parent=1 // pred_check_branch
      %59 = sbr.rel (0) target = $region29
    $region28: #{tpu_custom_call.1} parent=1 // pred_region
      %61 = dma.done [#allocation6], 2048
    $region29: #{tpu_custom_call.1} parent=1 // pred_fallthru
      _
    // Predicated region
    $region30: #{tpu_custom_call.1} parent=1 // pred_check
      _
    $region31: #{tpu_custom_call.1} parent=1 // pred_check_branch
      %63 = sbr.rel (0) target = $region33
    $region32: #{tpu_custom_call.1} parent=1 // pred_region
      %65 = dma.done [#allocation6], 2048
    $region33: #{tpu_custom_call.1} parent=1 // pred_fallthru
      _
    %v66 = vld [vmem:[#allocation2] sm:$0xff]
    %v67 = vld [vmem:[#allocation5] sm:$0xff]
    %v68 = vld [vmem:[#allocation5 + $0x8] sm:$0xff]
    %v69 = vld [vmem:[#allocation5 + $0x10] sm:$0xff]
    %v70 = vld [vmem:[#allocation5 + $0x18] sm:$0xff]
    %v71 = vld [vmem:[#allocation5 + $0x20] sm:$0xff]
    %v72 = vld [vmem:[#allocation5 + $0x28] sm:$0xff]
    %v73 = vld [vmem:[#allocation5 + $0x30] sm:$0xff]
    %v74 = vld [vmem:[#allocation5 + $0x38] sm:$0xff]
    %v75 = vld [vmem:[#allocation5 + $0x40] sm:$0xff]
    %v76 = vld [vmem:[#allocation5 + $0x48] sm:$0xff]
    %v77 = vld [vmem:[#allocation5 + $0x50] sm:$0xff]
    %v78 = vld [vmem:[#allocation5 + $0x58] sm:$0xff]
    %v79 = vld [vmem:[#allocation5 + $0x60] sm:$0xff]
    %v80 = vld [vmem:[#allocation5 + $0x68] sm:$0xff]
    %v81 = vld [vmem:[#allocation5 + $0x70] sm:$0xff]
    %v82 = vld [vmem:[#allocation5 + $0x78] sm:$0xff]
    %v83 = vld [vmem:[%s2] sm:$0x1]
    %v85 = vperm.slane %v83, 0
    %87 = vmatpush.msra.mxu0 %v82
    %88 = vmatpush.msra.mxu0 %v81
    %89 = vmatpush.msra.mxu0 %v80
    %90 = vmatpush.msra.mxu0 %v79
    %91 = vmatpush.msra.mxu0 %v78
    %92 = vmatpush.msra.mxu0 %v77
    %93 = vmatpush.msra.mxu0 %v76
    %94 = vmatpush.msra.mxu0 %v75
    %95 = vmatpush.msra.mxu0 %v74
    %96 = vmatpush.msra.mxu0 %v73
    %97 = vmatpush.msra.mxu0 %v72
    %98 = vmatpush.msra.mxu0 %v71
    %99 = vmatpush.msra.mxu0 %v70
    %100 = vmatpush.msra.mxu0 %v69
    %101 = vmatpush.msra.mxu0 %v68
    %102 = vmatpush.msra.mxu0 %v67
    %103 = vmatmul.f32.gmra.mxu0 %v66
    %v104 = vpop.f32.mrf.mxu0
    %v105 = vadd.f32 %v85, %v104
    %106 = vdwg.mxu0
    %v107 = vmax.f32 %v105, 0.0
    %v108 = vld [vmem:[#allocation7] sm:$0xff]
    %v109 = vld [vmem:[#allocation7 + $0x8] sm:$0xff]
    %v110 = vld [vmem:[#allocation7 + $0x10] sm:$0xff]
    %v111 = vld [vmem:[#allocation7 + $0x18] sm:$0xff]
    %v112 = vld [vmem:[#allocation7 + $0x20] sm:$0xff]
    %v113 = vld [vmem:[#allocation7 + $0x28] sm:$0xff]
    %v114 = vld [vmem:[#allocation7 + $0x30] sm:$0xff]
    %v115 = vld [vmem:[#allocation7 + $0x38] sm:$0xff]
    %v116 = vld [vmem:[#allocation7 + $0x40] sm:$0xff]
    %v117 = vld [vmem:[#allocation7 + $0x48] sm:$0xff]
    %v118 = vld [vmem:[#allocation7 + $0x50] sm:$0xff]
    %v119 = vld [vmem:[#allocation7 + $0x58] sm:$0xff]
    %v120 = vld [vmem:[#allocation7 + $0x60] sm:$0xff]
    %v121 = vld [vmem:[#allocation7 + $0x68] sm:$0xff]
    %v122 = vld [vmem:[#allocation7 + $0x70] sm:$0xff]
    %v123 = vld [vmem:[#allocation7 + $0x78] sm:$0xff]
    %v124 = vld [vmem:[%s4] sm:$0x1]
    %v126 = vperm.slane %v124, 0
    %128 = vmatpush.msra.mxu0 %v123
    %129 = vmatpush.msra.mxu0 %v122
    %130 = vmatpush.msra.mxu0 %v121
    %131 = vmatpush.msra.mxu0 %v120
    %132 = vmatpush.msra.mxu0 %v119
    %133 = vmatpush.msra.mxu0 %v118
    %134 = vmatpush.msra.mxu0 %v117
    %135 = vmatpush.msra.mxu0 %v116
    %136 = vmatpush.msra.mxu0 %v115
    %137 = vmatpush.msra.mxu0 %v114
    %138 = vmatpush.msra.mxu0 %v113
    %139 = vmatpush.msra.mxu0 %v112
    %140 = vmatpush.msra.mxu0 %v111
    %141 = vmatpush.msra.mxu0 %v110
    %142 = vmatpush.msra.mxu0 %v109
    %143 = vmatpush.msra.mxu0 %v108
    %144 = vmatmul.f32.gmra.mxu0 %v107
    %v145 = vpop.f32.mrf.mxu0
    %v146 = vadd.f32 %v126, %v145
    %147 = vdwg.mxu0
    %148 = vst [vmem:[#allocation8] sm:$0xff] %v146
    // Predicated region
    $region34: #{tpu_custom_call.1} parent=1 // pred_check
      _
    $region35: #{tpu_custom_call.1} parent=1 // pred_check_branch
      %150 = sbr.rel (0) target = $region37
    $region36: #{tpu_custom_call.1} parent=1 // pred_region
      %152 = vsyncadd [#allocation4], 0
      %s154 = sshll.u32 [#allocation8], 4
      %s155 = int_to_ptr.vmem [resolvable:$true] %s154
      %s156 = sshll.u32 %s5, 4
      %s157 = int_to_ptr.hbm [resolvable:$true] %s156
      %159 = dma.vmem_to_hbm [thread:$0]  %s155, 128, %s157, [#allocation4]
    $region37: #{tpu_custom_call.1} parent=1 // pred_fallthru
      _
    // Predicated region
    $region38: #{tpu_custom_call.1} parent=1 // pred_check
      _
    $region39: #{tpu_custom_call.1} parent=1 // pred_check_branch
      %161 = sbr.rel (0) target = $region41
    $region40: #{tpu_custom_call.1} parent=1 // pred_region
      %163 = dma.done [#allocation4], 128
    $region41: #{tpu_custom_call.1} parent=1 // pred_fallthru
      _
    %164 = vsyncpa [#allocation3], 1
    %165 = vsyncpa [#allocation6], 1
    %166 = vsyncpa [#allocation4], 1

</llo_original>
